<compile_context>
chip_gen: v7x
topology: tpu7x:2x2x1
jax: 0.10.0
libtpu: 0.0.40
codegen_flags: <defaults>
</compile_context>

<pallas_src>
import math
import functools

import jax
import jax.numpy as jnp
from jax import lax
from jax.experimental import pallas as pl
from jax.experimental.pallas import tpu as pltpu


# ---------------------------------------------------------------------------
# Stage 1: K/V projection -> head-major (B, H, L, Dh) outputs.
# ---------------------------------------------------------------------------
def _kv_proj_kernel(k_ref, v_ref, wk_ref, bk_ref, wv_ref, bv_ref,
                    kp_ref, vp_ref, *, n_head: int, head_dim: int):
    xk = k_ref[0]   # (tl, D)
    xv = v_ref[0]
    # One full-width matmul per projection (N = D): dense MXU fill.  Per-head
    # slabs are carved from the wide f32 result only when storing.
    yk = jnp.dot(xk, wk_ref[...], preferred_element_type=jnp.float32) + bk_ref[...]
    yv = jnp.dot(xv, wv_ref[...], preferred_element_type=jnp.float32) + bv_ref[...]
    for h in range(n_head):
        sl = slice(h * head_dim, (h + 1) * head_dim)
        kp_ref[0, h] = yk[:, sl].astype(kp_ref.dtype)
        vp_ref[0, h] = yv[:, sl].astype(vp_ref.dtype)


# ---------------------------------------------------------------------------
# Stage 2: fused Q projection + flash attention (online softmax over KV
# tiles) + fused c_proj.
# ---------------------------------------------------------------------------
def _flash_attn_kernel(q_ref, kp_ref, vp_ref, wq_ref, bq_ref, wo_ref, bo_ref,
                       o_ref, qh_sc, m_sc, l_sc, acc_sc,
                       *, n_head: int, head_dim: int, tq: int, tkv: int,
                       if_causal: bool, compute_dtype):
    qi = pl.program_id(1)
    ki = pl.program_id(2)
    nk = pl.num_programs(2)

    @pl.when(ki == 0)
    def _init():
        # Q projection fused here: one (tq, D) x (D, D) MXU matmul per q tile.
        # The 1/sqrt(head_dim) scale is pre-folded into wq/bq by the wrapper.
        yq = (jnp.dot(q_ref[0], wq_ref[...], preferred_element_type=jnp.float32)
              + bq_ref[...])                                   # (tq, D) f32
        for h in range(n_head):
            qh_sc[h] = yq[:, h * head_dim:(h + 1) * head_dim].astype(qh_sc.dtype)
        m_sc[...] = jnp.full_like(m_sc, -jnp.inf)
        l_sc[...] = jnp.zeros_like(l_sc)
        acc_sc[...] = jnp.zeros_like(acc_sc)

    def _tile_update(masked: bool):
        qh = qh_sc[...]        # (H, tq, Dh)  compute_dtype
        kh = kp_ref[0]         # (H, tkv, Dh)
        vh = vp_ref[0]

        # Head-batched QK^T on the MXU, f32 accumulation (scale pre-folded).
        s = jnp.einsum("hqd,hkd->hqk", qh, kh,
                       preferred_element_type=jnp.float32)

        if masked:
            rows = qi * tq + lax.broadcasted_iota(jnp.int32, s.shape, 1)
            cols = ki * tkv + lax.broadcasted_iota(jnp.int32, s.shape, 2)
            s = jnp.where(rows >= cols, s, jnp.finfo(jnp.float32).min)
        # TODO(synk): optional additive padding `attention_mask` input not wired in.

        # Online (flash) softmax update, all statistics in f32.
        m_prev = m_sc[...]
        m_new = jnp.maximum(m_prev, jnp.max(s, axis=-1, keepdims=True))
        alpha = jnp.exp(m_prev - m_new)
        p = jnp.exp(s - m_new)
        # TODO(synk): on v6e/v7x with Dh <= 64 a bf16 exp (with f32 l-sum) can
        # relieve the EUP; not enabled here (v5e has no bf16 EUP).
        l_sc[...] = alpha * l_sc[...] + jnp.sum(p, axis=-1, keepdims=True)
        acc_sc[...] = alpha * acc_sc[...] + jnp.einsum(
            "hqk,hkd->hqd", p.astype(compute_dtype), vh,
            preferred_element_type=jnp.float32)
        m_sc[...] = m_new

    if if_causal:
        row_lo = qi * tq
        row_hi = qi * tq + (tq - 1)
        col_lo = ki * tkv
        col_hi = ki * tkv + (tkv - 1)
        # Interior tiles fully at/below the diagonal: no masking work at all.
        pl.when(col_hi <= row_lo)(lambda: _tile_update(False))
        # Diagonal-straddling tiles: masked path.
        pl.when(jnp.logical_and(col_lo <= row_hi, col_hi > row_lo))(
            lambda: _tile_update(True))
        # Tiles fully above the diagonal: skipped (their K/V DMAs are elided
        # by the clamped kv index_map in the wrapper).
    else:
        _tile_update(False)

    @pl.when(ki == nk - 1)
    def _finalize():
        # EUP approximate reciprocal on the low-precision (perf) path only.
        approx = jnp.dtype(compute_dtype) != jnp.dtype(jnp.float32)
        inv_l = pl.reciprocal(l_sc[...], approx=approx)
        attn = (acc_sc[...] * inv_l).astype(compute_dtype)      # (H, tq, Dh)
        # Fused c_proj: accumulate per-head (tq,Dh)x(Dh,D_out) matmuls into a
        # single (tq, D_out) f32 value — no (H, tq, D_out) intermediate.
        d_out = o_ref.shape[-1]
        out = jnp.zeros((tq, d_out), jnp.float32)
        for h in range(n_head):
            out = out + jnp.dot(attn[h], wo_ref[h],
                                preferred_element_type=jnp.float32)
        out = out + bo_ref[...]
        # TODO(synk): for very large D_out on v7x, tile the c_proj over D_out
        # instead of keeping wo fully resident in VMEM.
        o_ref[0] = out.astype(o_ref.dtype)


# ---------------------------------------------------------------------------
# Wrapper
# ---------------------------------------------------------------------------
def _padded_bytes(shape, dtype):
    """Approximate VMEM footprint of one buffer after (8, 128) tile padding."""
    shape = list(shape)
    if len(shape) >= 1:
        shape[-1] = -(-shape[-1] // 128) * 128
    if len(shape) >= 2:
        shape[-2] = -(-shape[-2] // 8) * 8
    n = 1
    for s in shape:
        n *= int(s)
    return n * jnp.dtype(dtype).itemsize


def _vmem_cap_bytes():
    """Generation-aware VMEM cap: 7/8 of physical (~56 MiB v7x, ~112 MiB v5e/v6e)."""
    try:
        phys = int(pltpu.get_tpu_info().vmem_capacity_bytes)
    except Exception:
        phys = 64 * 1024 * 1024   # conservative (v7x-sized) fallback
    return (phys // 8) * 7


def self_attention(q, k, v, params, *, n_head: int, if_causal: bool,
                   compute_dtype=jnp.bfloat16,
                   seq_tile=None, q_tile=None, kv_tile=None):
    """q, k, v: (B, L, D) float32. Returns (B, L, D_out) float32."""
    assert q.shape == k.shape == v.shape
    B, L, D = q.shape
    assert D % n_head == 0, "input_dim must be divisible by n_head"
    Dh = D // n_head
    D_out = params["wo"].shape[1]

    # Tile defaults: 256 fills the 256x256 v6e/v7x MXU for QK^T / PV and
    # halves K/V re-read traffic; stage 1 is mem-bound so it gets 512.
    # TODO(synk): prefer 128 q/kv tiles on v5e (128-wide MXU) when detectable.
    tl = seq_tile if seq_tile is not None else min(L, 512)
    tq = q_tile if q_tile is not None else min(L, 256)
    tkv = kv_tile if kv_tile is not None else min(L, 256)
    assert L % tl == 0 and L % tq == 0 and L % tkv == 0

    cdt = jnp.dtype(compute_dtype)
    cap = _vmem_cap_bytes()
    inv_scale = 1.0 / math.sqrt(Dh)

    # --- wrapper-side layout / scaling plumbing (one-time, plain XLA) -------
    wq_s = (params["wq"] * inv_scale).astype(cdt)              # (D, D) pre-scaled
    bq_s = (params["bq"] * inv_scale).reshape(1, D).astype(jnp.float32)
    wk_f = params["wk"].astype(cdt)                            # (D, D)
    bk_f = params["bk"].reshape(1, D).astype(jnp.float32)
    wv_f = params["wv"].astype(cdt)
    bv_f = params["bv"].reshape(1, D).astype(jnp.float32)
    wo_h = params["wo"].reshape(n_head, Dh, D_out).astype(cdt)  # (H, Dh, D_out)
    bo2 = params["bo"].reshape(1, D_out).astype(jnp.float32)

    qc, kc, vc = (x.astype(cdt) for x in (q, k, v))

    # --- stage 1: K/V projection -> head-major (B, H, L, Dh) ----------------
    kv_in_block = pl.BlockSpec((1, tl, D), lambda b, l: (b, l, 0))
    w_dd = pl.BlockSpec((D, D), lambda b, l: (0, 0))
    b_1d = pl.BlockSpec((1, D), lambda b, l: (0, 0))
    headmajor_out = pl.BlockSpec((1, n_head, tl, Dh), lambda b, l: (b, 0, l, 0))

    vmem1 = (2 * 2 * _padded_bytes((1, tl, D), cdt)                 # k, v blocks
             + 2 * 2 * _padded_bytes((1, n_head, tl, Dh), cdt)      # kp, vp blocks
             + 2 * _padded_bytes((D, D), cdt)                       # wk, wv
             + 2 * _padded_bytes((1, D), jnp.float32)               # bk, bv
             + 2 * _padded_bytes((tl, D), jnp.float32))             # yk, yv temps
    vmem1 = int(min(cap, vmem1 + vmem1 // 2 + (8 << 20)))

    kp, vp = pl.pallas_call(
        functools.partial(_kv_proj_kernel, n_head=n_head, head_dim=Dh),
        out_shape=tuple(jax.ShapeDtypeStruct((B, n_head, L, Dh), cdt)
                        for _ in range(2)),
        grid_spec=pltpu.PrefetchScalarGridSpec(
            num_scalar_prefetch=0,
            grid=(B, L // tl),
            in_specs=[kv_in_block, kv_in_block, w_dd, b_1d, w_dd, b_1d],
            out_specs=[headmajor_out, headmajor_out],
        ),
        compiler_params=pltpu.CompilerParams(
            dimension_semantics=("parallel", "parallel"),
            vmem_limit_bytes=vmem1),
    )(kc, vc, wk_f, bk_f, wv_f, bv_f)

    # --- stage 2: fused Q proj + flash attention + fused c_proj -------------
    q_block = pl.BlockSpec((1, tq, D), lambda b, qi, ki: (b, qi, 0))

    if if_causal:
        # Clamp the kv block index so causally-dead KV steps repeat the last
        # valid block index -> Pallas elides those K/V DMAs entirely.
        def kv_idx(b, qi, ki):
            kmax = (qi * tq + (tq - 1)) // tkv
            return (b, 0, jnp.minimum(ki, kmax), 0)
    else:
        def kv_idx(b, qi, ki):
            return (b, 0, ki, 0)

    kv_block = pl.BlockSpec((1, n_head, tkv, Dh), kv_idx)
    wq_spec = pl.BlockSpec((D, D), lambda b, qi, ki: (0, 0))
    bq_spec = pl.BlockSpec((1, D), lambda b, qi, ki: (0, 0))
    wo_spec = pl.BlockSpec((n_head, Dh, D_out), lambda b, qi, ki: (0, 0, 0))
    bo_spec = pl.BlockSpec((1, D_out), lambda b, qi, ki: (0, 0))
    # TODO(synk): for D_out / Dh < 128 the stores are lane-masked; real model
    # dims (multiples of 128) are lane-dense.
    out_block = pl.BlockSpec((1, tq, D_out), lambda b, qi, ki: (b, qi, 0))

    vmem2 = (2 * _padded_bytes((1, tq, D), cdt)                     # q block
             + 2 * 2 * _padded_bytes((1, n_head, tkv, Dh), cdt)     # kp, vp blocks
             + 2 * _padded_bytes((1, tq, D_out), jnp.float32)       # out block
             + _padded_bytes((D, D), cdt)                           # wq
             + _padded_bytes((1, D), jnp.float32)                   # bq
             + _padded_bytes((n_head, Dh, D_out), cdt)              # wo
             + _padded_bytes((1, D_out), jnp.float32)               # bo
             + _padded_bytes((n_head, tq, Dh), cdt)                 # qh scratch
             + 2 * _padded_bytes((n_head, tq, 1), jnp.float32)      # m, l
             + _padded_bytes((n_head, tq, Dh), jnp.float32)         # acc
             # in-kernel live temporaries (score, prob, prob-cast, q-proj, c_proj):
             + 2 * _padded_bytes((n_head, tq, tkv), jnp.float32)
             + _padded_bytes((n_head, tq, tkv), cdt)
             + _padded_bytes((tq, D), jnp.float32)
             + _padded_bytes((tq, D_out), jnp.float32))
    vmem2 = int(min(cap, vmem2 + vmem2 // 2 + (8 << 20)))

    out = pl.pallas_call(
        functools.partial(_flash_attn_kernel, n_head=n_head, head_dim=Dh,
                          tq=tq, tkv=tkv, if_causal=if_causal,
                          compute_dtype=cdt),
        out_shape=jax.ShapeDtypeStruct((B, L, D_out), jnp.float32),
        grid_spec=pltpu.PrefetchScalarGridSpec(
            num_scalar_prefetch=0,
            grid=(B, L // tq, L // tkv),
            in_specs=[q_block, kv_block, kv_block,
                      wq_spec, bq_spec, wo_spec, bo_spec],
            out_specs=out_block,
            scratch_shapes=[
                pltpu.VMEM((n_head, tq, Dh), cdt),          # projected Q tile
                pltpu.VMEM((n_head, tq, 1), jnp.float32),   # running max  m
                pltpu.VMEM((n_head, tq, 1), jnp.float32),   # running sum  l
                pltpu.VMEM((n_head, tq, Dh), jnp.float32),  # output accum
            ],
        ),
        compiler_params=pltpu.CompilerParams(
            dimension_semantics=("parallel", "parallel", "arbitrary"),
            vmem_limit_bytes=vmem2),
    )(qc, kp, vp, wq_s, bq_s, wo_h, bo2)

    return out


def _reference(q, k, v, params, n_head, if_causal):
    """Pure-JAX reference mirroring the PyTorch forward (eval mode, no dropout)."""
    B, L, D = q.shape
    Dh = D // n_head
    def lin(x, w, b):
        return x @ w + b
    wq = lin(q, params["wq"], params["bq"]).reshape(B, L, n_head, Dh).transpose(0, 2, 1, 3)
    wk = lin(k, params["wk"], params["bk"]).reshape(B, L, n_head, Dh).transpose(0, 2, 3, 1)
    wv = lin(v, params["wv"], params["bv"]).reshape(B, L, n_head, Dh).transpose(0, 2, 1, 3)
    s = jnp.matmul(wq, wk) / math.sqrt(Dh)
    if if_causal:
        mask = jnp.tril(jnp.ones((L, L), dtype=bool))[None, None]
        s = jnp.where(mask, s, jnp.finfo(s.dtype).min)
    p = jax.nn.softmax(s, axis=-1)
    o = jnp.matmul(p, wv).transpose(0, 2, 1, 3).reshape(B, L, D)
    return lin(o, params["wo"], params["bo"])


if __name__ == "__main__":
    # Hyperparameters (small, consistent with the module).
    input_dim = 32
    output_dim = 32
    n_head = 4
    batch = 2
    length = 8
    if_causal = True

    key = jax.random.PRNGKey(0)
    keys = jax.random.split(key, 16)

    def init_linear(kw, kb, d_in, d_out):
        bound = 1.0 / math.sqrt(d_in)  # matches torch nn.Linear default init range
        w = jax.random.uniform(kw, (d_in, d_out), jnp.float32, -bound, bound)
        b = jax.random.uniform(kb, (d_out,), jnp.float32, -bound, bound)
        return w, b

    wq, bq = init_linear(keys[0], keys[1], input_dim, input_dim)
    wk, bk = init_linear(keys[2], keys[3], input_dim, input_dim)
    wv, bv = init_linear(keys[4], keys[5], input_dim, input_dim)
    wo, bo = init_linear(keys[6], keys[7], input_dim, output_dim)
    params = dict(wq=wq, bq=bq, wk=wk, bk=bk, wv=wv, bv=bv, wo=wo, bo=bo)

    q = jax.random.normal(keys[8], (batch, length, input_dim), jnp.float32)
    k = jax.random.normal(keys[9], (batch, length, input_dim), jnp.float32)
    v = jax.random.normal(keys[10], (batch, length, input_dim), jnp.float32)

    ref = _reference(q, k, v, params, n_head, if_causal)

    # Full-precision path: tight check of the fused-Q / online-softmax structure.
    out_f32 = self_attention(q, k, v, params, n_head=n_head, if_causal=if_causal,
                             compute_dtype=jnp.float32)
    out_f32 = jax.block_until_ready(out_f32)
    assert out_f32.shape == (batch, length, output_dim)
    assert jnp.allclose(out_f32, ref, atol=1e-3, rtol=1e-3), "f32 Pallas mismatch vs reference"

    # bf16 matmul-operand path (v5e/v6e/v7x performance configuration).
    out_bf16 = self_attention(q, k, v, params, n_head=n_head, if_causal=if_causal,
                              compute_dtype=jnp.bfloat16)
    out_bf16 = jax.block_until_ready(out_bf16)
    assert out_bf16.shape == (batch, length, output_dim)
    assert jnp.allclose(out_bf16, ref, atol=5e-2, rtol=5e-2), "bf16 Pallas mismatch vs reference"

    # Non-causal path.
    ref_nc = _reference(q, k, v, params, n_head, False)
    out_nc = self_attention(q, k, v, params, n_head=n_head, if_causal=False,
                            compute_dtype=jnp.float32)
    out_nc = jax.block_until_ready(out_nc)
    assert jnp.allclose(out_nc, ref_nc, atol=1e-3, rtol=1e-3), "non-causal mismatch"

    # Multi-tile causal config: exercises causal tile-skip, the clamped KV
    # index_map (DMA elision), the two-path masking, and multi-step
    # accumulation with small tile overrides.
    length2 = 32
    q2 = jax.random.normal(keys[11], (batch, length2, input_dim), jnp.float32)
    k2 = jax.random.normal(keys[12], (batch, length2, input_dim), jnp.float32)
    v2 = jax.random.normal(keys[13], (batch, length2, input_dim), jnp.float32)
    ref2 = _reference(q2, k2, v2, params, n_head, True)
    out2 = self_attention(q2, k2, v2, params, n_head=n_head, if_causal=True,
                          compute_dtype=jnp.float32,
                          seq_tile=16, q_tile=8, kv_tile=8)
    out2 = jax.block_until_ready(out2)
    assert jnp.allclose(out2, ref2, atol=1e-3, rtol=1e-3), "multi-tile causal mismatch"

    print("KERNEL_OK")
</pallas_src>

<mosaic_0001>
module attributes {stable_mosaic.version = 11 : i64} {
  func.func @_kv_proj_kernel(%arg0: i32, %arg1: i32, %arg2: memref<1x8x32xf32, #tpu.memory_space<vmem>>, %arg3: memref<1x8x32xf32, #tpu.memory_space<vmem>>, %arg4: memref<32x32xf32, #tpu.memory_space<vmem>>, %arg5: memref<1x32xf32, #tpu.memory_space<vmem>>, %arg6: memref<32x32xf32, #tpu.memory_space<vmem>>, %arg7: memref<1x32xf32, #tpu.memory_space<vmem>>, %arg8: memref<1x4x8x8xf32, #tpu.memory_space<vmem>>, %arg9: memref<1x4x8x8xf32, #tpu.memory_space<vmem>>) attributes {dimension_semantics = [#tpu.dimension_semantics<parallel>, #tpu.dimension_semantics<parallel>], iteration_bounds = array<i64: 2, 1>, scalar_prefetch = 0 : i64, scratch_operands = 0 : i64, tpu.core_type = #tpu.core_type<tc>, window_params = [{transform_indices = @transform_0, window_bounds = array<i64: 1, 8, 32>}, {transform_indices = @transform_1, window_bounds = array<i64: 1, 8, 32>}, {pipeline_mode = #tpu.pipeline_mode<synchronous>, transform_indices = @transform_2, window_bounds = array<i64: 32, 32>}, {pipeline_mode = #tpu.pipeline_mode<synchronous>, transform_indices = @transform_3, window_bounds = array<i64: 1, 32>}, {pipeline_mode = #tpu.pipeline_mode<synchronous>, transform_indices = @transform_4, window_bounds = array<i64: 32, 32>}, {pipeline_mode = #tpu.pipeline_mode<synchronous>, transform_indices = @transform_5, window_bounds = array<i64: 1, 32>}, {transform_indices = @transform_6, window_bounds = array<i64: 1, 4, 8, 8>}, {transform_indices = @transform_7, window_bounds = array<i64: 1, 4, 8, 8>}]} {
    %c0 = arith.constant 0 : index
    %c0_0 = arith.constant 0 : index
    %c0_1 = arith.constant 0 : index
    %0 = vector.load %arg2[%c0, %c0_0, %c0_1] : memref<1x8x32xf32, #tpu.memory_space<vmem>>, vector<1x8x32xf32>
    %1 = vector.shape_cast %0 : vector<1x8x32xf32> to vector<8x32xf32>
    %c0_2 = arith.constant 0 : index
    %c0_3 = arith.constant 0 : index
    %c0_4 = arith.constant 0 : index
    %2 = vector.load %arg3[%c0_2, %c0_3, %c0_4] : memref<1x8x32xf32, #tpu.memory_space<vmem>>, vector<1x8x32xf32>
    %3 = vector.shape_cast %2 : vector<1x8x32xf32> to vector<8x32xf32>
    %c0_5 = arith.constant 0 : index
    %c0_6 = arith.constant 0 : index
    %4 = vector.load %arg4[%c0_5, %c0_6] : memref<32x32xf32, #tpu.memory_space<vmem>>, vector<32x32xf32>
    %cst = arith.constant dense<0.000000e+00> : vector<8x32xf32>
    %5 = tpu.matmul %1, %4, %cst {dimension_numbers = #tpu.dot_dimension_numbers<[1], [0], [0], [1], [0, 0, 1, 1], [], []>} : vector<8x32xf32>, vector<32x32xf32>, vector<8x32xf32> -> vector<8x32xf32>
    %c0_7 = arith.constant 0 : index
    %c0_8 = arith.constant 0 : index
    %6 = vector.load %arg5[%c0_7, %c0_8] : memref<1x32xf32, #tpu.memory_space<vmem>>, vector<1x32xf32>
    %7 = vector.broadcast %6 : vector<1x32xf32> to vector<8x32xf32>
    %8 = arith.addf %5, %7 : vector<8x32xf32>
    %c0_9 = arith.constant 0 : index
    %c0_10 = arith.constant 0 : index
    %9 = vector.load %arg6[%c0_9, %c0_10] : memref<32x32xf32, #tpu.memory_space<vmem>>, vector<32x32xf32>
    %cst_11 = arith.constant dense<0.000000e+00> : vector<8x32xf32>
    %10 = tpu.matmul %3, %9, %cst_11 {dimension_numbers = #tpu.dot_dimension_numbers<[1], [0], [0], [1], [0, 0, 1, 1], [], []>} : vector<8x32xf32>, vector<32x32xf32>, vector<8x32xf32> -> vector<8x32xf32>
    %c0_12 = arith.constant 0 : index
    %c0_13 = arith.constant 0 : index
    %11 = vector.load %arg7[%c0_12, %c0_13] : memref<1x32xf32, #tpu.memory_space<vmem>>, vector<1x32xf32>
    %12 = vector.broadcast %11 : vector<1x32xf32> to vector<8x32xf32>
    %13 = arith.addf %10, %12 : vector<8x32xf32>
    %14 = vector.extract_strided_slice %8 {offsets = [0, 0], sizes = [8, 8], strides = [1, 1]} : vector<8x32xf32> to vector<8x8xf32>
    %c0_14 = arith.constant 0 : index
    %c0_15 = arith.constant 0 : index
    %c0_16 = arith.constant 0 : index
    %c0_17 = arith.constant 0 : index
    %15 = vector.load %arg8[%c0_14, %c0_15, %c0_16, %c0_17] : memref<1x4x8x8xf32, #tpu.memory_space<vmem>>, vector<1x1x8x8xf32>
    %16 = vector.shape_cast %15 : vector<1x1x8x8xf32> to vector<8x8xf32>
    %17 = vector.shape_cast %14 : vector<8x8xf32> to vector<1x1x8x8xf32>
    tpu.vector_store %arg8[%c0_14, %c0_15, %c0_16, %c0_17], %17 {strides = array<i32>} : memref<1x4x8x8xf32, #tpu.memory_space<vmem>>, vector<1x1x8x8xf32>,
    %18 = vector.extract_strided_slice %13 {offsets = [0, 0], sizes = [8, 8], strides = [1, 1]} : vector<8x32xf32> to vector<8x8xf32>
    %c0_18 = arith.constant 0 : index
    %c0_19 = arith.constant 0 : index
    %c0_20 = arith.constant 0 : index
    %c0_21 = arith.constant 0 : index
    %19 = vector.load %arg9[%c0_18, %c0_19, %c0_20, %c0_21] : memref<1x4x8x8xf32, #tpu.memory_space<vmem>>, vector<1x1x8x8xf32>
    %20 = vector.shape_cast %19 : vector<1x1x8x8xf32> to vector<8x8xf32>
    %21 = vector.shape_cast %18 : vector<8x8xf32> to vector<1x1x8x8xf32>
    tpu.vector_store %arg9[%c0_18, %c0_19, %c0_20, %c0_21], %21 {strides = array<i32>} : memref<1x4x8x8xf32, #tpu.memory_space<vmem>>, vector<1x1x8x8xf32>,
    %22 = vector.extract_strided_slice %8 {offsets = [0, 8], sizes = [8, 8], strides = [1, 1]} : vector<8x32xf32> to vector<8x8xf32>
    %c0_22 = arith.constant 0 : index
    %c1 = arith.constant 1 : index
    %c0_23 = arith.constant 0 : index
    %c0_24 = arith.constant 0 : index
    %23 = vector.load %arg8[%c0_22, %c1, %c0_23, %c0_24] : memref<1x4x8x8xf32, #tpu.memory_space<vmem>>, vector<1x1x8x8xf32>
    %24 = vector.shape_cast %23 : vector<1x1x8x8xf32> to vector<8x8xf32>
    %25 = vector.shape_cast %22 : vector<8x8xf32> to vector<1x1x8x8xf32>
    tpu.vector_store %arg8[%c0_22, %c1, %c0_23, %c0_24], %25 {strides = array<i32>} : memref<1x4x8x8xf32, #tpu.memory_space<vmem>>, vector<1x1x8x8xf32>,
    %26 = vector.extract_strided_slice %13 {offsets = [0, 8], sizes = [8, 8], strides = [1, 1]} : vector<8x32xf32> to vector<8x8xf32>
    %c0_25 = arith.constant 0 : index
    %c1_26 = arith.constant 1 : index
    %c0_27 = arith.constant 0 : index
    %c0_28 = arith.constant 0 : index
    %27 = vector.load %arg9[%c0_25, %c1_26, %c0_27, %c0_28] : memref<1x4x8x8xf32, #tpu.memory_space<vmem>>, vector<1x1x8x8xf32>
    %28 = vector.shape_cast %27 : vector<1x1x8x8xf32> to vector<8x8xf32>
    %29 = vector.shape_cast %26 : vector<8x8xf32> to vector<1x1x8x8xf32>
    tpu.vector_store %arg9[%c0_25, %c1_26, %c0_27, %c0_28], %29 {strides = array<i32>} : memref<1x4x8x8xf32, #tpu.memory_space<vmem>>, vector<1x1x8x8xf32>,
    %30 = vector.extract_strided_slice %8 {offsets = [0, 16], sizes = [8, 8], strides = [1, 1]} : vector<8x32xf32> to vector<8x8xf32>
    %c0_29 = arith.constant 0 : index
    %c2 = arith.constant 2 : index
    %c0_30 = arith.constant 0 : index
    %c0_31 = arith.constant 0 : index
    %31 = vector.load %arg8[%c0_29, %c2, %c0_30, %c0_31] : memref<1x4x8x8xf32, #tpu.memory_space<vmem>>, vector<1x1x8x8xf32>
    %32 = vector.shape_cast %31 : vector<1x1x8x8xf32> to vector<8x8xf32>
    %33 = vector.shape_cast %30 : vector<8x8xf32> to vector<1x1x8x8xf32>
    tpu.vector_store %arg8[%c0_29, %c2, %c0_30, %c0_31], %33 {strides = array<i32>} : memref<1x4x8x8xf32, #tpu.memory_space<vmem>>, vector<1x1x8x8xf32>,
    %34 = vector.extract_strided_slice %13 {offsets = [0, 16], sizes = [8, 8], strides = [1, 1]} : vector<8x32xf32> to vector<8x8xf32>
    %c0_32 = arith.constant 0 : index
    %c2_33 = arith.constant 2 : index
    %c0_34 = arith.constant 0 : index
    %c0_35 = arith.constant 0 : index
    %35 = vector.load %arg9[%c0_32, %c2_33, %c0_34, %c0_35] : memref<1x4x8x8xf32, #tpu.memory_space<vmem>>, vector<1x1x8x8xf32>
    %36 = vector.shape_cast %35 : vector<1x1x8x8xf32> to vector<8x8xf32>
    %37 = vector.shape_cast %34 : vector<8x8xf32> to vector<1x1x8x8xf32>
    tpu.vector_store %arg9[%c0_32, %c2_33, %c0_34, %c0_35], %37 {strides = array<i32>} : memref<1x4x8x8xf32, #tpu.memory_space<vmem>>, vector<1x1x8x8xf32>,
    %38 = vector.extract_strided_slice %8 {offsets = [0, 24], sizes = [8, 8], strides = [1, 1]} : vector<8x32xf32> to vector<8x8xf32>
    %c0_36 = arith.constant 0 : index
    %c3 = arith.constant 3 : index
    %c0_37 = arith.constant 0 : index
    %c0_38 = arith.constant 0 : index
    %39 = vector.load %arg8[%c0_36, %c3, %c0_37, %c0_38] : memref<1x4x8x8xf32, #tpu.memory_space<vmem>>, vector<1x1x8x8xf32>
    %40 = vector.shape_cast %39 : vector<1x1x8x8xf32> to vector<8x8xf32>
    %41 = vector.shape_cast %38 : vector<8x8xf32> to vector<1x1x8x8xf32>
    tpu.vector_store %arg8[%c0_36, %c3, %c0_37, %c0_38], %41 {strides = array<i32>} : memref<1x4x8x8xf32, #tpu.memory_space<vmem>>, vector<1x1x8x8xf32>,
    %42 = vector.extract_strided_slice %13 {offsets = [0, 24], sizes = [8, 8], strides = [1, 1]} : vector<8x32xf32> to vector<8x8xf32>
    %c0_39 = arith.constant 0 : index
    %c3_40 = arith.constant 3 : index
    %c0_41 = arith.constant 0 : index
    %c0_42 = arith.constant 0 : index
    %43 = vector.load %arg9[%c0_39, %c3_40, %c0_41, %c0_42] : memref<1x4x8x8xf32, #tpu.memory_space<vmem>>, vector<1x1x8x8xf32>
    %44 = vector.shape_cast %43 : vector<1x1x8x8xf32> to vector<8x8xf32>
    %45 = vector.shape_cast %42 : vector<8x8xf32> to vector<1x1x8x8xf32>
    tpu.vector_store %arg9[%c0_39, %c3_40, %c0_41, %c0_42], %45 {strides = array<i32>} : memref<1x4x8x8xf32, #tpu.memory_space<vmem>>, vector<1x1x8x8xf32>,
    return
  }
  func.func @transform_0(%arg0: i32, %arg1: i32) -> (i32, i32, i32) {
    %c0_i32 = arith.constant 0 : i32
    %c0_i32_0 = arith.constant 0 : i32
    return %arg0, %arg1, %c0_i32 : i32, i32, i32
  }
  func.func @transform_1(%arg0: i32, %arg1: i32) -> (i32, i32, i32) {
    %c0_i32 = arith.constant 0 : i32
    %c0_i32_0 = arith.constant 0 : i32
    return %arg0, %arg1, %c0_i32 : i32, i32, i32
  }
  func.func @transform_2(%arg0: i32, %arg1: i32) -> (i32, i32) {
    %c0_i32 = arith.constant 0 : i32
    %c0_i32_0 = arith.constant 0 : i32
    %c0_i32_1 = arith.constant 0 : i32
    return %c0_i32, %c0_i32_0 : i32, i32
  }
  func.func @transform_3(%arg0: i32, %arg1: i32) -> (i32, i32) {
    %c0_i32 = arith.constant 0 : i32
    %c0_i32_0 = arith.constant 0 : i32
    %c0_i32_1 = arith.constant 0 : i32
    return %c0_i32, %c0_i32_0 : i32, i32
  }
  func.func @transform_4(%arg0: i32, %arg1: i32) -> (i32, i32) {
    %c0_i32 = arith.constant 0 : i32
    %c0_i32_0 = arith.constant 0 : i32
    %c0_i32_1 = arith.constant 0 : i32
    return %c0_i32, %c0_i32_0 : i32, i32
  }
  func.func @transform_5(%arg0: i32, %arg1: i32) -> (i32, i32) {
    %c0_i32 = arith.constant 0 : i32
    %c0_i32_0 = arith.constant 0 : i32
    %c0_i32_1 = arith.constant 0 : i32
    return %c0_i32, %c0_i32_0 : i32, i32
  }
  func.func @transform_6(%arg0: i32, %arg1: i32) -> (i32, i32, i32, i32) {
    %c0_i32 = arith.constant 0 : i32
    %c0_i32_0 = arith.constant 0 : i32
    %c0_i32_1 = arith.constant 0 : i32
    return %arg0, %c0_i32, %arg1, %c0_i32_0 : i32, i32, i32, i32
  }
  func.func @transform_7(%arg0: i32, %arg1: i32) -> (i32, i32, i32, i32) {
    %c0_i32 = arith.constant 0 : i32
    %c0_i32_0 = arith.constant 0 : i32
    %c0_i32_1 = arith.constant 0 : i32
    return %arg0, %c0_i32, %arg1, %c0_i32_0 : i32, i32, i32, i32
  }
}

</mosaic_0001>

<llo_original>
// kernel: tpu_custom_call.1
$region0: #{tpu_custom_call.1}
  #allocation0 [shape = 'u32[]', space=smem, size = 0x4, offset = 0x4, fixed_abs, tag = 'smem constant byte address 0x4 - core index']
  #allocation1 [shape = 'u32[144,128]{1,0:T(1,128)}', space=vmem, size = 0x12000, scoped, tag = 'internal scratch']
  %s0 = inlined_call_operand.hbm [shape: f32[2,8,32], index: 0, kind: input, shape index: {}]
  %s1 = inlined_call_operand.hbm [shape: f32[2,8,32], index: 1, kind: input, shape index: {}]
  %s2 = inlined_call_operand.hbm [shape: f32[32,32], index: 2, kind: input, shape index: {}]
  %s3 = inlined_call_operand.vmem [shape: f32[1,32], index: 3, kind: input, shape index: {}]
  %s4 = inlined_call_operand.hbm [shape: f32[32,32], index: 4, kind: input, shape index: {}]
  %s5 = inlined_call_operand.vmem [shape: f32[1,32], index: 5, kind: input, shape index: {}]
  %s6 = inlined_call_operand.hbm [shape: f32[2,4,8,8], index: 6, kind: output, shape index: {0}]
  %s7 = inlined_call_operand.hbm [shape: f32[2,4,8,8], index: 7, kind: output, shape index: {1}]
  %8 = xla_tuple %s6, %s7
  %s9 = sld [smem:[#allocation0]]
  $region81: #{tpu_custom_call.1} parent=0
    _
  %s11 = ssub.s32 1, %s9
  %s12 = scalar_select 0, %s11, %s9
  $region1: #{tpu_custom_call.1} parent=0
    #allocation2 [shape = 'u8[8192]{0}', space=vmem, size = 0x2000, scoped, tag = 'input window, operand 0']
    #allocation3 [shape = 's32[2]{0}', space=sflag, size = 0x8, scoped, tag = 'scoped memory for tpu_custom_call.1']
    #allocation4 [shape = 's32[2]{0}', space=sflag, size = 0x8, scoped, tag = 'scoped memory for tpu_custom_call.1']
    #allocation5 [shape = 'u8[8192]{0}', space=vmem, size = 0x2000, scoped, tag = 'input window, operand 1']
    #allocation6 [shape = 's32[2]{0}', space=sflag, size = 0x8, scoped, tag = 'scoped memory for tpu_custom_call.1']
    #allocation7 [shape = 'u8[16384]{0}', space=vmem, size = 0x4000, scoped, tag = 'input window, operand 2, single buffered']
    #allocation8 [shape = 'u8[16384]{0}', space=vmem, size = 0x4000, scoped, tag = 'input window, operand 4, single buffered']
    #allocation9 [shape = 's32[1]{0}', space=sflag, size = 0x4, scoped, tag = 'scoped memory for tpu_custom_call.1']
    #allocation10 [shape = 'u8[32768]{0}', space=vmem, size = 0x8000, scoped, tag = 'output window, operand 0']
    #allocation11 [shape = 'u8[32768]{0}', space=vmem, size = 0x8000, scoped, tag = 'output window, operand 1']
    #allocation12 [shape = 's32[2]{0}', space=sflag, size = 0x8, scoped, tag = 'scoped memory for tpu_custom_call.1']
    %13 = vsyncpa [#allocation3], 0
    %s14 = scalar_lea.sflag [#allocation3], 1
    %15 = vsyncpa %s14, 0
    %16 = vsyncpa [#allocation6], 0
    %s17 = scalar_lea.sflag [#allocation6], 1
    %18 = vsyncpa %s17, 0
    %19 = vsyncpa [#allocation9], 0
    %20 = vsyncpa [#allocation4], 0
    %s21 = scalar_lea.sflag [#allocation4], 1
    %22 = vsyncpa %s21, 0
    %23 = vsyncpa [#allocation12], 0
    %s24 = scalar_lea.sflag [#allocation12], 1
    %25 = vsyncpa %s24, 0
    loop: start=0, step=1, limit=4
    $region2: #{tpu_custom_call.1} parent=1 // loop_pre_header
      _
    $region3: #{tpu_custom_call.1} parent=1 // loop_header
      %s27 = sphi 0, %s31
      %p28 = scmp.ge.s32.totalorder %s27, 4
      %s34 = sphi 0, %s46
      %s35 = sphi 0, %s42
      %s36 = sphi 0, %s34
      %s37 = sphi 0, %s35
      %s38 = sphi 0, %s36
      %s39 = sphi 0, %s37
      %s51 = sphi 0, %s53
      %s54 = sphi 0, %s51
      %s55 = sphi 0, %s54
      %s71 = sphi 0, %s55
      %s79 = sphi 0, %s81
      %s82 = sphi 0, %s79
      %s83 = sphi 0, %s82
      %s99 = sphi 0, %s83
      %s103 = sphi 0, %s103
      %s105 = sphi 0, %s103
      %s106 = sphi 0, %s105
      %s120 = sphi 0, %s106
      %s124 = sphi 0, %s124
      %s126 = sphi 0, %s124
      %s127 = sphi 0, %s126
      %s141 = sphi 0, %s127
      %s145 = sphi 0, %s145
      %s147 = sphi 0, %s145
      %s148 = sphi 0, %s147
      %s162 = sphi 0, %s148
      %s166 = sphi 0, %s166
      %s168 = sphi 0, %s166
      %s169 = sphi 0, %s168
      %s183 = sphi 0, %s169
      %s191 = sphi 0, %s193
      %s194 = sphi 0, %s191
      %s195 = sphi 0, %s194
      %s211 = sphi 0, %s195
      %s219 = sphi 0, %s221
      %s222 = sphi 0, %s219
      %s223 = sphi 0, %s222
      %s239 = sphi 0, %s223
    $region4: #{tpu_custom_call.1} parent=1 // loop_header_branch
      %30 = sbr.rel (%p28) target = $region8
    $region5: #{tpu_custom_call.1} parent=1 // loop_body
      %s32 = ssub.s32 %s27, 1
      %s33 = ssub.s32 %s27, 2
      %s40 = sadd.s32 1, %s35
      %p41 = scmp.ge.s32.totalorder %s40, 1
      %s42 = scalar_select %p41, 0, %s40
      %s43 = sadd.s32 1, %s34
      %s44 = scalar_select %p41, %s43, %s34
      %p45 = scmp.ge.s32.totalorder %s44, 2
      %s46 = scalar_select %p45, 0, %s44
      %s47 = ssub.s32 %s34, %s46
      %s48 = ssub.s32 %s35, %s42
      %s49 = sor.u32 %s47, %s48
      %p50 = scmp.eq.s32.totalorder %s49, 0
      %s52 = sadd.s32 %s51, 1
      %s53 = scalar_select %p50, %s51, %s52
      %p56 = pneg %p50
      %p57 = scmp.eq.s32.totalorder %s27, 1
      %p58 = por %p56, %p57
      %p59 = scmp.ne.s32.totalorder %s51, %s54
      %p60 = scmp.eq.s32.totalorder %s27, 0
      %p61 = por %p59, %p60
      %p62 = scmp.ne.s32.totalorder %s51, %s54
      %p63 = scmp.eq.s32.totalorder %s32, 1
      %p64 = por %p62, %p63
      %p65 = scmp.ne.s32.totalorder %s54, %s55
      %p66 = scmp.eq.s32.totalorder %s32, 0
      %p67 = por %p65, %p66
      %p68 = scmp.ne.s32.totalorder %s54, %s55
      %p69 = scmp.eq.s32.totalorder %s33, 1
      %p70 = por %p68, %p69
      %p72 = scmp.ne.s32.totalorder %s55, %s71
      %p73 = scmp.eq.s32.totalorder %s33, 0
      %p74 = por %p72, %p73
      %s75 = ssub.s32 %s34, %s46
      %s76 = ssub.s32 %s35, %s42
      %s77 = sor.u32 %s75, %s76
      %p78 = scmp.eq.s32.totalorder %s77, 0
      %s80 = sadd.s32 %s79, 1
      %s81 = scalar_select %p78, %s79, %s80
      %p84 = pneg %p78
      %p85 = scmp.eq.s32.totalorder %s27, 1
      %p86 = por %p84, %p85
      %p87 = scmp.ne.s32.totalorder %s79, %s82
      %p88 = scmp.eq.s32.totalorder %s27, 0
      %p89 = por %p87, %p88
      %p90 = scmp.ne.s32.totalorder %s79, %s82
      %p91 = scmp.eq.s32.totalorder %s32, 1
      %p92 = por %p90, %p91
      %p93 = scmp.ne.s32.totalorder %s82, %s83
      %p94 = scmp.eq.s32.totalorder %s32, 0
      %p95 = por %p93, %p94
      %p96 = scmp.ne.s32.totalorder %s82, %s83
      %p97 = scmp.eq.s32.totalorder %s33, 1
      %p98 = por %p96, %p97
      %p100 = scmp.ne.s32.totalorder %s83, %s99
      %p101 = scmp.eq.s32.totalorder %s33, 0
      %p102 = por %p100, %p101
      %s104 = sadd.s32 %s103, 1
      %p107 = scmp.eq.s32.totalorder %s27, 1
      %p108 = scmp.ne.s32.totalorder %s103, %s105
      %p109 = scmp.eq.s32.totalorder %s27, 0
      %p110 = por %p108, %p109
      %p111 = scmp.ne.s32.totalorder %s103, %s105
      %p112 = scmp.eq.s32.totalorder %s32, 1
      %p113 = por %p111, %p112
      %p114 = scmp.ne.s32.totalorder %s105, %s106
      %p115 = scmp.eq.s32.totalorder %s32, 0
      %p116 = por %p114, %p115
      %p117 = scmp.ne.s32.totalorder %s105, %s106
      %p118 = scmp.eq.s32.totalorder %s33, 1
      %p119 = por %p117, %p118
      %p121 = scmp.ne.s32.totalorder %s106, %s120
      %p122 = scmp.eq.s32.totalorder %s33, 0
      %p123 = por %p121, %p122
      %s125 = sadd.s32 %s124, 1
      %p128 = scmp.eq.s32.totalorder %s27, 1
      %p129 = scmp.ne.s32.totalorder %s124, %s126
      %p130 = scmp.eq.s32.totalorder %s27, 0
      %p131 = por %p129, %p130
      %p132 = scmp.ne.s32.totalorder %s124, %s126
      %p133 = scmp.eq.s32.totalorder %s32, 1
      %p134 = por %p132, %p133
      %p135 = scmp.ne.s32.totalorder %s126, %s127
      %p136 = scmp.eq.s32.totalorder %s32, 0
      %p137 = por %p135, %p136
      %p138 = scmp.ne.s32.totalorder %s126, %s127
      %p139 = scmp.eq.s32.totalorder %s33, 1
      %p140 = por %p138, %p139
      %p142 = scmp.ne.s32.totalorder %s127, %s141
      %p143 = scmp.eq.s32.totalorder %s33, 0
      %p144 = por %p142, %p143
      %s146 = sadd.s32 %s145, 1
      %p149 = scmp.eq.s32.totalorder %s27, 1
      %p150 = scmp.ne.s32.totalorder %s145, %s147
      %p151 = scmp.eq.s32.totalorder %s27, 0
      %p152 = por %p150, %p151
      %p153 = scmp.ne.s32.totalorder %s145, %s147
      %p154 = scmp.eq.s32.totalorder %s32, 1
      %p155 = por %p153, %p154
      %p156 = scmp.ne.s32.totalorder %s147, %s148
      %p157 = scmp.eq.s32.totalorder %s32, 0
      %p158 = por %p156, %p157
      %p159 = scmp.ne.s32.totalorder %s147, %s148
      %p160 = scmp.eq.s32.totalorder %s33, 1
      %p161 = por %p159, %p160
      %p163 = scmp.ne.s32.totalorder %s148, %s162
      %p164 = scmp.eq.s32.totalorder %s33, 0
      %p165 = por %p163, %p164
      %s167 = sadd.s32 %s166, 1
      %p170 = scmp.eq.s32.totalorder %s27, 1
      %p171 = scmp.ne.s32.totalorder %s166, %s168
      %p172 = scmp.eq.s32.totalorder %s27, 0
      %p173 = por %p171, %p172
      %p174 = scmp.ne.s32.totalorder %s166, %s168
      %p175 = scmp.eq.s32.totalorder %s32, 1
      %p176 = por %p174, %p175
      %p177 = scmp.ne.s32.totalorder %s168, %s169
      %p178 = scmp.eq.s32.totalorder %s32, 0
      %p179 = por %p177, %p178
      %p180 = scmp.ne.s32.totalorder %s168, %s169
      %p181 = scmp.eq.s32.totalorder %s33, 1
      %p182 = por %p180, %p181
      %p184 = scmp.ne.s32.totalorder %s169, %s183
      %p185 = scmp.eq.s32.totalorder %s33, 0
      %p186 = por %p184, %p185
      %s187 = ssub.s32 %s34, %s46
      %s188 = ssub.s32 %s35, %s42
      %s189 = sor.u32 %s187, %s188
      %p190 = scmp.eq.s32.totalorder %s189, 0
      %s192 = sadd.s32 %s191, 1
      %s193 = scalar_select %p190, %s191, %s192
      %p196 = pneg %p190
      %p197 = scmp.eq.s32.totalorder %s27, 1
      %p198 = por %p196, %p197
      %p199 = scmp.ne.s32.totalorder %s191, %s194
      %p200 = scmp.eq.s32.totalorder %s27, 0
      %p201 = por %p199, %p200
      %p202 = scmp.ne.s32.totalorder %s191, %s194
      %p203 = scmp.eq.s32.totalorder %s32, 1
      %p204 = por %p202, %p203
      %p205 = scmp.ne.s32.totalorder %s194, %s195
      %p206 = scmp.eq.s32.totalorder %s32, 0
      %p207 = por %p205, %p206
      %p208 = scmp.ne.s32.totalorder %s194, %s195
      %p209 = scmp.eq.s32.totalorder %s33, 1
      %p210 = por %p208, %p209
      %p212 = scmp.ne.s32.totalorder %s195, %s211
      %p213 = scmp.eq.s32.totalorder %s33, 0
      %p214 = por %p212, %p213
      %s215 = ssub.s32 %s34, %s46
      %s216 = ssub.s32 %s35, %s42
      %s217 = sor.u32 %s215, %s216
      %p218 = scmp.eq.s32.totalorder %s217, 0
      %s220 = sadd.s32 %s219, 1
      %s221 = scalar_select %p218, %s219, %s220
      %p224 = pneg %p218
      %p225 = scmp.eq.s32.totalorder %s27, 1
      %p226 = por %p224, %p225
      %p227 = scmp.ne.s32.totalorder %s219, %s222
      %p228 = scmp.eq.s32.totalorder %s27, 0
      %p229 = por %p227, %p228
      %p230 = scmp.ne.s32.totalorder %s219, %s222
      %p231 = scmp.eq.s32.totalorder %s32, 1
      %p232 = por %p230, %p231
      %p233 = scmp.ne.s32.totalorder %s222, %s223
      %p234 = scmp.eq.s32.totalorder %s32, 0
      %p235 = por %p233, %p234
      %p236 = scmp.ne.s32.totalorder %s222, %s223
      %p237 = scmp.eq.s32.totalorder %s33, 1
      %p238 = por %p236, %p237
      %p240 = scmp.ne.s32.totalorder %s223, %s239
      %p241 = scmp.eq.s32.totalorder %s33, 0
      %p242 = por %p240, %p241
      %p243 = scmp.le.s32.totalorder 1, %s27
      %p244 = scmp.lt.s32.totalorder %s27, 3
      %p245 = pnand %p243, %p244
      %p246 = pneg %p245
      // Predicated region
      $region9: #{tpu_custom_call.1} parent=5 // pred_check
        _
      $region10: #{tpu_custom_call.1} parent=5 // pred_check_branch
        %248 = sbr.rel (%p245) target = $region12
      $region11: #{tpu_custom_call.1} parent=5 // pred_region
        %s249 = ssub.s32 %s27, 1
        // Predicated region
        $region13: #{tpu_custom_call.1} parent=11 // pred_check
          %p250 = pneg %p116
        $region14: #{tpu_custom_call.1} parent=11 // pred_check_branch
          %252 = sbr.rel (%p250) target = $region16
        $region15: #{tpu_custom_call.1} parent=11 // pred_region
          %s254 = ssub.s32 512, 512
          %255 = vsyncadd [#allocation6], %s254
          %s256 = sshll.u32 [#allocation7], 4
          %s257 = int_to_ptr.vmem [resolvable:$true] %s256
          %262 = dma.hbm_to_vmem [thread:$0]  %s2, 512, %s257, [#allocation6], 128, 128, 8
        $region16: #{tpu_custom_call.1} parent=11 // pred_fallthru
          _
        // Predicated region
        $region17: #{tpu_custom_call.1} parent=11 // pred_check
          %p263 = pneg %p137
        $region18: #{tpu_custom_call.1} parent=11 // pred_check_branch
          %265 = sbr.rel (%p263) target = $region20
        $region19: #{tpu_custom_call.1} parent=11 // pred_region
          _
        $region20: #{tpu_custom_call.1} parent=11 // pred_fallthru
          _
        // Predicated region
        $region21: #{tpu_custom_call.1} parent=11 // pred_check
          %p266 = pneg %p158
        $region22: #{tpu_custom_call.1} parent=11 // pred_check_branch
          %268 = sbr.rel (%p266) target = $region24
        $region23: #{tpu_custom_call.1} parent=11 // pred_region
          %s270 = ssub.s32 512, 512
          %271 = vsyncadd [#allocation9], %s270
          %s272 = sshll.u32 [#allocation8], 4
          %s273 = int_to_ptr.vmem [resolvable:$true] %s272
          %278 = dma.hbm_to_vmem [thread:$0]  %s4, 512, %s273, [#allocation9], 128, 128, 8
        $region24: #{tpu_custom_call.1} parent=11 // pred_fallthru
          _
        // Predicated region
        $region25: #{tpu_custom_call.1} parent=11 // pred_check
          %p279 = pneg %p179
        $region26: #{tpu_custom_call.1} parent=11 // pred_check_branch
          %281 = sbr.rel (%p279) target = $region28
        $region27: #{tpu_custom_call.1} parent=11 // pred_region
          _
        $region28: #{tpu_custom_call.1} parent=11 // pred_fallthru
          _
      $region12: #{tpu_custom_call.1} parent=5 // pred_fallthru
        _
      %p282 = scmp.lt.s32.totalorder %s27, 2
      // Predicated region
      $region29: #{tpu_custom_call.1} parent=5 // pred_check
        %p283 = pneg %p282
      $region30: #{tpu_custom_call.1} parent=5 // pred_check_branch
        %285 = sbr.rel (%p283) target = $region32
      $region31: #{tpu_custom_call.1} parent=5 // pred_region
        // Predicated region
        $region33: #{tpu_custom_call.1} parent=31 // pred_check
          %p286 = pneg %p61
        $region34: #{tpu_custom_call.1} parent=31 // pred_check_branch
          %288 = sbr.rel (%p286) target = $region36
        $region35: #{tpu_custom_call.1} parent=31 // pred_region
          %s289 = sand.u32 %s51, 1
          %s290 = scalar_lea.sflag [#allocation3], %s289
          %s291 = sand.u32 %s51, 1
          %s292 = smul.addr %s291, 8
          %s293 = scalar_lea.vmem [#allocation2], %s292
          %s295 = ssub.s32 128, 128
          %296 = vsyncadd %s290, %s295
          %s297 = sadd.s32 %s35, %s34
          %s298 = smul.addr %s297, 128
          %s299 = scalar_lea.hbm %s0, %s298
          %s301 = sshll.u32 %s293, 4
          %s302 = int_to_ptr.vmem [resolvable:$true] %s301
          %304 = dma.hbm_to_vmem [thread:$0]  %s299, 128, %s302, %s290
        $region36: #{tpu_custom_call.1} parent=31 // pred_fallthru
          _
        // Predicated region
        $region37: #{tpu_custom_call.1} parent=31 // pred_check
          %p305 = pneg %p89
        $region38: #{tpu_custom_call.1} parent=31 // pred_check_branch
          %307 = sbr.rel (%p305) target = $region40
        $region39: #{tpu_custom_call.1} parent=31 // pred_region
          %s308 = sand.u32 %s27, 1
          %s309 = scalar_lea.sflag [#allocation6], %s308
          %s310 = sand.u32 %s79, 1
          %s311 = smul.addr %s310, 8
          %s312 = scalar_lea.vmem [#allocation5], %s311
          %s314 = ssub.s32 128, 128
          %315 = vsyncadd %s309, %s314
          %s316 = sadd.s32 %s35, %s34
          %s317 = smul.addr %s316, 128
          %s318 = scalar_lea.hbm %s1, %s317
          %s320 = sshll.u32 %s312, 4
          %s321 = int_to_ptr.vmem [resolvable:$true] %s320
          %323 = dma.hbm_to_vmem [thread:$0]  %s318, 128, %s321, %s309
        $region40: #{tpu_custom_call.1} parent=31 // pred_fallthru
          _
      $region32: #{tpu_custom_call.1} parent=5 // pred_fallthru
        _
      %p324 = scmp.le.s32.totalorder 1, %s27
      %p325 = scmp.lt.s32.totalorder %s27, 3
      %p326 = pnand %p324, %p325
      %p327 = pneg %p326
      // Predicated region
      $region41: #{tpu_custom_call.1} parent=5 // pred_check
        _
      $region42: #{tpu_custom_call.1} parent=5 // pred_check_branch
        %329 = sbr.rel (%p326) target = $region44
      $region43: #{tpu_custom_call.1} parent=5 // pred_region
        %s330 = ssub.s32 %s27, 1
        %s331 = sand.u32 %s54, 1
        %s332 = scalar_lea.sflag [#allocation3], %s331
        %s333 = sand.u32 %s54, 1
        %s334 = smul.addr %s333, 8
        %s335 = scalar_lea.vmem [#allocation2], %s334
        // Predicated region
        $region45: #{tpu_custom_call.1} parent=43 // pred_check
          %p336 = pneg %p67
        $region46: #{tpu_custom_call.1} parent=43 // pred_check_branch
          %338 = sbr.rel (%p336) target = $region48
        $region47: #{tpu_custom_call.1} parent=43 // pred_region
          %339 = dma.done %s332, 128
        $region48: #{tpu_custom_call.1} parent=43 // pred_fallthru
          _
        %s340 = sand.u32 %s32, 1
        %s341 = scalar_lea.sflag [#allocation6], %s340
        %s342 = sand.u32 %s82, 1
        %s343 = smul.addr %s342, 8
        %s344 = scalar_lea.vmem [#allocation5], %s343
        // Predicated region
        $region49: #{tpu_custom_call.1} parent=43 // pred_check
          %p345 = pneg %p95
        $region50: #{tpu_custom_call.1} parent=43 // pred_check_branch
          %347 = sbr.rel (%p345) target = $region52
        $region51: #{tpu_custom_call.1} parent=43 // pred_region
          %348 = dma.done %s341, 128
        $region52: #{tpu_custom_call.1} parent=43 // pred_fallthru
          _
        // Predicated region
        $region53: #{tpu_custom_call.1} parent=43 // pred_check
          %p349 = pneg %p116
        $region54: #{tpu_custom_call.1} parent=43 // pred_check_branch
          %351 = sbr.rel (%p349) target = $region56
        $region55: #{tpu_custom_call.1} parent=43 // pred_region
          %352 = dma.done [#allocation6], 512
        $region56: #{tpu_custom_call.1} parent=43 // pred_fallthru
          _
        // Predicated region
        $region57: #{tpu_custom_call.1} parent=43 // pred_check
          %p353 = pneg %p158
        $region58: #{tpu_custom_call.1} parent=43 // pred_check_branch
          %355 = sbr.rel (%p353) target = $region60
        $region59: #{tpu_custom_call.1} parent=43 // pred_region
          %356 = dma.done [#allocation9], 512
        $region60: #{tpu_custom_call.1} parent=43 // pred_fallthru
          _
        %s357 = sand.u32 %s54, 1
        %s358 = scalar_lea.sflag [#allocation3], %s357
        %s359 = sand.u32 %s54, 1
        %s360 = smul.addr %s359, 8
        %s361 = scalar_lea.vmem [#allocation2], %s360
        %p362 = pneg %p67
        %p363 = pneg %p64
        %s364 = sand.u32 %s32, 1
        %s365 = scalar_lea.sflag [#allocation6], %s364
        %s366 = sand.u32 %s82, 1
        %s367 = smul.addr %s366, 8
        %s368 = scalar_lea.vmem [#allocation5], %s367
        %p369 = pneg %p95
        %p370 = pneg %p92
        %p371 = pneg %p116
        %p372 = pneg %p113
        %p373 = pneg %p137
        %p374 = pneg %p134
        %p375 = pneg %p158
        %p376 = pneg %p155
        %p377 = pneg %p179
        %p378 = pneg %p176
        %p379 = pneg %p207
        %p380 = pneg %p204
        %s381 = sand.u32 %s194, 1
        %s382 = scalar_lea.sflag [#allocation4], %s381
        %s383 = sand.u32 %s194, 1
        %s384 = smul.addr %s383, 32
        %s385 = scalar_lea.vmem [#allocation10], %s384
        %p386 = pneg %p235
        %p387 = pneg %p232
        %s388 = sand.u32 %s222, 1
        %s389 = scalar_lea.sflag [#allocation12], %s388
        %s390 = sand.u32 %s222, 1
        %s391 = smul.addr %s390, 32
        %s392 = scalar_lea.vmem [#allocation11], %s391
        %v393 = vld [vmem:[%s335] sm:$0xff]
        %v394 = vld [vmem:[%s344] sm:$0xff]
        %v395 = vld [vmem:[#allocation7] sm:$0xff]
        %v396 = vld [vmem:[#allocation7 + $0x8] sm:$0xff]
        %v397 = vld [vmem:[#allocation7 + $0x10] sm:$0xff]
        %v398 = vld [vmem:[#allocation7 + $0x18] sm:$0xff]
        %v399 = vld [vmem:[%s3] sm:$0x1]
        %v401 = vlaneseq
        %v402 = vshrl.u32 %v401, 7
        %v403 = vsub.s32 0, %v402
        %v404 = vrot.slane %v399, %v403
        %vm406 = vcmask 261120
        %v408 = vsel %vm406, %v393, 0
        %410 = vmatprep.subr.mxu0 0.0
        %411 = vmatpush1.msra.mxu0 %v395
        %412 = vmatprep.subr.mxu0 0.0
        %413 = vmatpush1.msra.mxu0 %v396
        %414 = vmatprep.subr.mxu0 0.0
        %415 = vmatpush1.msra.mxu0 %v397
        %416 = vmatprep.subr.mxu0 0.0
        %417 = vmatpush1.msra.mxu0 %v398
        %418 = vmatprep.subr.mxu0 0.0
        %419 = vmatpush1.msra.mxu0 0.0
        %420 = vmatprep.subr.mxu0 0.0
        %421 = vmatpush1.msra.mxu0 0.0
        %422 = vmatprep.subr.mxu0 0.0
        %423 = vmatpush1.msra.mxu0 0.0
        %424 = vmatprep.subr.mxu0 0.0
        %425 = vmatpush1.msra.mxu0 0.0
        %426 = vmatprep.subr.mxu0 0.0
        %427 = vmatpush1.msra.mxu0 0.0
        %428 = vmatprep.subr.mxu0 0.0
        %429 = vmatpush1.msra.mxu0 0.0
        %430 = vmatprep.subr.mxu0 0.0
        %431 = vmatpush1.msra.mxu0 0.0
        %432 = vmatprep.subr.mxu0 0.0
        %433 = vmatpush1.msra.mxu0 0.0
        %434 = vmatprep.subr.mxu0 0.0
        %435 = vmatpush1.msra.mxu0 0.0
        %436 = vmatprep.subr.mxu0 0.0
        %437 = vmatpush1.msra.mxu0 0.0
        %438 = vmatprep.subr.mxu0 0.0
        %439 = vmatpush1.msra.mxu0 0.0
        %440 = vmatprep.subr.mxu0 0.0
        %441 = vmatpush1.msra.mxu0 0.0
        %442 = vmatprep.subr.mxu0 0.0
        %443 = vmatpush1.msra.mxu0 0.0
        %444 = vmatprep.subr.mxu0 0.0
        %445 = vmatpush1.msra.mxu0 0.0
        %446 = vmatprep.subr.mxu0 0.0
        %447 = vmatpush1.msra.mxu0 0.0
        %448 = vmatprep.subr.mxu0 0.0
        %449 = vmatpush1.msra.mxu0 0.0
        %450 = vmatprep.subr.mxu0 0.0
        %451 = vmatpush1.msra.mxu0 0.0
        %452 = vmatprep.subr.mxu0 0.0
        %453 = vmatpush1.msra.mxu0 0.0
        %454 = vmatprep.subr.mxu0 0.0
        %455 = vmatpush1.msra.mxu0 0.0
        %456 = vmatprep.subr.mxu0 0.0
        %457 = vmatpush1.msra.mxu0 0.0
        %458 = vmatprep.subr.mxu0 0.0
        %459 = vmatpush1.msra.mxu0 0.0
        %460 = vmatprep.subr.mxu0 0.0
        %461 = vmatpush1.msra.mxu0 0.0
        %462 = vmatprep.subr.mxu0 0.0
        %463 = vmatpush1.msra.mxu0 0.0
        %464 = vmatprep.subr.mxu0 0.0
        %465 = vmatpush1.msra.mxu0 0.0
        %466 = vmatprep.subr.mxu0 0.0
        %467 = vmatpush1.msra.mxu0 0.0
        %468 = vmatprep.subr.mxu0 0.0
        %469 = vmatpush1.msra.mxu0 0.0
        %470 = vmatprep.subr.mxu0 0.0
        %471 = vmatpush1.msra.mxu0 0.0
        %472 = vmatprep.subr.mxu0 0.0
        %473 = vmatpush1.msra.mxu0 0.0
        %474 = vmatprep.mubr.f32.mxu0 0.0
        %475 = vmatmul.mubr.f32.gmra.mrb[0].mxu0 %v408
        %v476 = vpop.f32.mrb[0].mxu0
        %v477 = vadd.f32 %v404, %v476
        %v478 = vpop.f32.mrb[0].mxu0
        %479 = vdwg.mxu0
        %v480 = vld [vmem:[#allocation8] sm:$0xff]
        %v481 = vld [vmem:[#allocation8 + $0x8] sm:$0xff]
        %v482 = vld [vmem:[#allocation8 + $0x10] sm:$0xff]
        %v483 = vld [vmem:[#allocation8 + $0x18] sm:$0xff]
        %v484 = vld [vmem:[%s5] sm:$0x1]
        %v486 = vlaneseq
        %v487 = vshrl.u32 %v486, 7
        %v488 = vsub.s32 0, %v487
        %v489 = vrot.slane %v484, %v488
        %v492 = vsel %vm406, %v394, 0
        %494 = vmatprep.subr.mxu0 0.0
        %495 = vmatpush1.msra.mxu0 %v480
        %496 = vmatprep.subr.mxu0 0.0
        %497 = vmatpush1.msra.mxu0 %v481
        %498 = vmatprep.subr.mxu0 0.0
        %499 = vmatpush1.msra.mxu0 %v482
        %500 = vmatprep.subr.mxu0 0.0
        %501 = vmatpush1.msra.mxu0 %v483
        %502 = vmatprep.subr.mxu0 0.0
        %503 = vmatpush1.msra.mxu0 0.0
        %504 = vmatprep.subr.mxu0 0.0
        %505 = vmatpush1.msra.mxu0 0.0
        %506 = vmatprep.subr.mxu0 0.0
        %507 = vmatpush1.msra.mxu0 0.0
        %508 = vmatprep.subr.mxu0 0.0
        %509 = vmatpush1.msra.mxu0 0.0
        %510 = vmatprep.subr.mxu0 0.0
        %511 = vmatpush1.msra.mxu0 0.0
        %512 = vmatprep.subr.mxu0 0.0
        %513 = vmatpush1.msra.mxu0 0.0
        %514 = vmatprep.subr.mxu0 0.0
        %515 = vmatpush1.msra.mxu0 0.0
        %516 = vmatprep.subr.mxu0 0.0
        %517 = vmatpush1.msra.mxu0 0.0
        %518 = vmatprep.subr.mxu0 0.0
        %519 = vmatpush1.msra.mxu0 0.0
        %520 = vmatprep.subr.mxu0 0.0
        %521 = vmatpush1.msra.mxu0 0.0
        %522 = vmatprep.subr.mxu0 0.0
        %523 = vmatpush1.msra.mxu0 0.0
        %524 = vmatprep.subr.mxu0 0.0
        %525 = vmatpush1.msra.mxu0 0.0
        %526 = vmatprep.subr.mxu0 0.0
        %527 = vmatpush1.msra.mxu0 0.0
        %528 = vmatprep.subr.mxu0 0.0
        %529 = vmatpush1.msra.mxu0 0.0
        %530 = vmatprep.subr.mxu0 0.0
        %531 = vmatpush1.msra.mxu0 0.0
        %532 = vmatprep.subr.mxu0 0.0
        %533 = vmatpush1.msra.mxu0 0.0
        %534 = vmatprep.subr.mxu0 0.0
        %535 = vmatpush1.msra.mxu0 0.0
        %536 = vmatprep.subr.mxu0 0.0
        %537 = vmatpush1.msra.mxu0 0.0
        %538 = vmatprep.subr.mxu0 0.0
        %539 = vmatpush1.msra.mxu0 0.0
        %540 = vmatprep.subr.mxu0 0.0
        %541 = vmatpush1.msra.mxu0 0.0
        %542 = vmatprep.subr.mxu0 0.0
        %543 = vmatpush1.msra.mxu0 0.0
        %544 = vmatprep.subr.mxu0 0.0
        %545 = vmatpush1.msra.mxu0 0.0
        %546 = vmatprep.subr.mxu0 0.0
        %547 = vmatpush1.msra.mxu0 0.0
        %548 = vmatprep.subr.mxu0 0.0
        %549 = vmatpush1.msra.mxu0 0.0
        %550 = vmatprep.subr.mxu0 0.0
        %551 = vmatpush1.msra.mxu0 0.0
        %552 = vmatprep.subr.mxu0 0.0
        %553 = vmatpush1.msra.mxu0 0.0
        %554 = vmatprep.subr.mxu0 0.0
        %555 = vmatpush1.msra.mxu0 0.0
        %556 = vmatprep.subr.mxu0 0.0
        %557 = vmatpush1.msra.mxu0 0.0
        %558 = vmatprep.mubr.f32.mxu0 0.0
        %559 = vmatmul.mubr.f32.gmra.mrb[0].mxu0 %v492
        %v560 = vpop.f32.mrb[0].mxu0
        %v561 = vadd.f32 %v489, %v560
        %v562 = vpop.f32.mrb[0].mxu0
        %563 = vdwg.mxu0
        %vm564 = vcmask 64512
        %565 = vst.msk [vmem:[%s385] sm:$0xff] %vm564, %v477
        %566 = vst.msk [vmem:[%s392] sm:$0xff] %vm564, %v561
        %568 = vrot.lane.b32.xlu0 %v477, 120
        %v569 = vpop.permute.xlu0 %568
        %s571 = scalar_lea.vmem %s385, 8 [#allocation10]
        %572 = vst.msk [vmem:[%s571] sm:$0xff] %vm564, %v569
        %574 = vrot.lane.b32.xlu0 %v561, 120
        %v575 = vpop.permute.xlu0 %574
        %s577 = scalar_lea.vmem %s392, 8 [#allocation11]
        %578 = vst.msk [vmem:[%s577] sm:$0xff] %vm564, %v575
        %579 = vrot.lane.b32.xlu0 %v477, 112
        %v580 = vpop.permute.xlu0 %579
        %s582 = scalar_lea.vmem %s385, 16 [#allocation10]
        %583 = vst.msk [vmem:[%s582] sm:$0xff] %vm564, %v580
        %584 = vrot.lane.b32.xlu0 %v561, 112
        %v585 = vpop.permute.xlu0 %584
        %s587 = scalar_lea.vmem %s392, 16 [#allocation11]
        %588 = vst.msk [vmem:[%s587] sm:$0xff] %vm564, %v585
        %589 = vrot.lane.b32.xlu0 %v477, 104
        %v590 = vpop.permute.xlu0 %589
        %s592 = scalar_lea.vmem %s385, 24 [#allocation10]
        %593 = vst.msk [vmem:[%s592] sm:$0xff] %vm564, %v590
        %594 = vrot.lane.b32.xlu0 %v561, 104
        %v595 = vpop.permute.xlu0 %594
        %s597 = scalar_lea.vmem %s392, 24 [#allocation11]
        %598 = vst.msk [vmem:[%s597] sm:$0xff] %vm564, %v595
        %s599 = sand.u32 %s194, 1
        %s600 = scalar_lea.sflag [#allocation4], %s599
        %s601 = sand.u32 %s194, 1
        %s602 = smul.addr %s601, 32
        %s603 = scalar_lea.vmem [#allocation10], %s602
        %s604 = sand.u32 %s222, 1
        %s605 = scalar_lea.sflag [#allocation12], %s604
        %s606 = sand.u32 %s222, 1
        %s607 = smul.addr %s606, 32
        %s608 = scalar_lea.vmem [#allocation11], %s607
        // Predicated region
        $region61: #{tpu_custom_call.1} parent=43 // pred_check
          %p609 = pneg %p204
        $region62: #{tpu_custom_call.1} parent=43 // pred_check_branch
          %611 = sbr.rel (%p609) target = $region64
        $region63: #{tpu_custom_call.1} parent=43 // pred_region
          %s613 = ssub.s32 512, 512
          %614 = vsyncadd %s600, %s613
          %s615 = smul.addr %s36, 4
          %s616 = sadd.s32 %s37, %s615
          %s617 = smul.addr %s616, 128
          %s618 = scalar_lea.hbm %s6, %s617
          %s619 = sshll.u32 %s603, 4
          %s620 = int_to_ptr.vmem [resolvable:$true] %s619
          %625 = dma.vmem_to_hbm [thread:$0]  %s620, 512, %s618, %s600, 128, 128, 8
        $region64: #{tpu_custom_call.1} parent=43 // pred_fallthru
          _
        // Predicated region
        $region65: #{tpu_custom_call.1} parent=43 // pred_check
          %p626 = pneg %p232
        $region66: #{tpu_custom_call.1} parent=43 // pred_check_branch
          %628 = sbr.rel (%p626) target = $region68
        $region67: #{tpu_custom_call.1} parent=43 // pred_region
          %s630 = ssub.s32 512, 512
          %631 = vsyncadd %s605, %s630
          %s632 = smul.addr %s36, 4
          %s633 = sadd.s32 %s37, %s632
          %s634 = smul.addr %s633, 128
          %s635 = scalar_lea.hbm %s7, %s634
          %s636 = sshll.u32 %s608, 4
          %s637 = int_to_ptr.vmem [resolvable:$true] %s636
          %642 = dma.vmem_to_hbm [thread:$0]  %s637, 512, %s635, %s605, 128, 128, 8
        $region68: #{tpu_custom_call.1} parent=43 // pred_fallthru
          _
      $region44: #{tpu_custom_call.1} parent=5 // pred_fallthru
        _
      %p643 = scmp.le.s32.totalorder 2, %s27
      // Predicated region
      $region69: #{tpu_custom_call.1} parent=5 // pred_check
        %p644 = pneg %p643
      $region70: #{tpu_custom_call.1} parent=5 // pred_check_branch
        %646 = sbr.rel (%p644) target = $region72
      $region71: #{tpu_custom_call.1} parent=5 // pred_region
        %s647 = ssub.s32 %s27, 2
        // Predicated region
        $region73: #{tpu_custom_call.1} parent=71 // pred_check
          %p648 = pneg %p210
        $region74: #{tpu_custom_call.1} parent=71 // pred_check_branch
          %650 = sbr.rel (%p648) target = $region76
        $region75: #{tpu_custom_call.1} parent=71 // pred_region
          %s651 = sand.u32 %s195, 1
          %s652 = scalar_lea.sflag [#allocation4], %s651
          %s653 = sand.u32 %s195, 1
          %s654 = smul.addr %s653, 32
          %s655 = scalar_lea.vmem [#allocation10], %s654
          %656 = dma.done %s652, 512
        $region76: #{tpu_custom_call.1} parent=71 // pred_fallthru
          _
        // Predicated region
        $region77: #{tpu_custom_call.1} parent=71 // pred_check
          %p657 = pneg %p238
        $region78: #{tpu_custom_call.1} parent=71 // pred_check_branch
          %659 = sbr.rel (%p657) target = $region80
        $region79: #{tpu_custom_call.1} parent=71 // pred_region
          %s660 = sand.u32 %s223, 1
          %s661 = scalar_lea.sflag [#allocation12], %s660
          %s662 = sand.u32 %s223, 1
          %s663 = smul.addr %s662, 32
          %s664 = scalar_lea.vmem [#allocation11], %s663
          %665 = dma.done %s661, 512
        $region80: #{tpu_custom_call.1} parent=71 // pred_fallthru
          _
      $region72: #{tpu_custom_call.1} parent=5 // pred_fallthru
        _
    $region6: #{tpu_custom_call.1} parent=1 // loop_footer
      %s31 = sadd.s32 1, %s27
    $region7: #{tpu_custom_call.1} parent=1 // loop_footer_branch
      %26 = sbr.rel target = $region3
    $region8: #{tpu_custom_call.1} parent=1 // loop_exit
      _
    %666 = vsyncpa [#allocation3], 1
    %s667 = scalar_lea.sflag [#allocation3], 1
    %668 = vsyncpa %s667, 1
    %669 = vsyncpa [#allocation6], 1
    %s670 = scalar_lea.sflag [#allocation6], 1
    %671 = vsyncpa %s670, 1
    %672 = vsyncpa [#allocation9], 1
    %673 = vsyncpa [#allocation4], 1
    %s674 = scalar_lea.sflag [#allocation4], 1
    %675 = vsyncpa %s674, 1
    %676 = vsyncpa [#allocation12], 1
    %s677 = scalar_lea.sflag [#allocation12], 1
    %678 = vsyncpa %s677, 1

</llo_original>
